<compile_context>
chip_gen: v6e
topology: v6e:2x2x1
jax: 0.10.0
libtpu: 0.0.40
codegen_flags: <defaults>
</compile_context>

<pallas_src>
import functools

import jax
import jax.numpy as jnp
from jax.experimental import pallas as pl
from jax.experimental.pallas import tpu as pltpu


# ---------------------------------------------------------------------------
# Fused kernel: conv1 -> BN1 -> ReLU -> conv2 -> BN2 -> +residual -> ReLU
# ---------------------------------------------------------------------------
def fused_block_kernel(x_ref, t1_ref, t2_ref, bias_ref, o_ref,
                       xcat_ref, ycat_ref, *, NB, H):
    # x_ref   : (NB*H, W*Cin)       f32 lane-dense rows (NB images stacked on M)
    # t1_ref  : (3*W*Cin, W*Cout)   bf16 width-Toeplitz weight, BN1 scale folded
    # t2_ref  : (3*W*Cout, W*Cout)  bf16 width-Toeplitz weight, BN2 scale folded
    # bias_ref: (2, W*Cout)         f32 folded BN biases (row 0: bn1, row 1: bn2)
    # o_ref   : (NB*H, W*Cout)      f32 output rows
    # xcat/ycat: (NB*H, 3*W*C)      bf16 staging: 3 shifted tap windows, K-concat
    WC_in = x_ref.shape[1]
    WC_out = o_ref.shape[1]

    x = x_ref[...]                               # (NB*H, WC_in) f32
    xb = x.astype(jnp.bfloat16)
    zin = jnp.zeros((1, WC_in), jnp.bfloat16)

    # ---- build K-concat staging for conv1 (per-image height halo = zero rows) ----
    xcat_ref[:, WC_in:2 * WC_in] = xb            # middle tap (kh=1), no shift
    for n in range(NB):                          # static unroll over images
        r = n * H
        # tap kh=0: output row h reads input row h-1
        xcat_ref[r:r + 1, 0:WC_in] = zin
        xcat_ref[r + 1:r + H, 0:WC_in] = xb[r:r + H - 1]
        # tap kh=2: output row h reads input row h+1
        xcat_ref[r:r + H - 1, 2 * WC_in:3 * WC_in] = xb[r + 1:r + H]
        xcat_ref[r + H - 1:r + H, 2 * WC_in:3 * WC_in] = zin

    # ---- conv1 + BN1 + ReLU: single MXU push, K = 3*W*Cin, f32 accumulate ----
    acc1 = jnp.dot(xcat_ref[...], t1_ref[...],
                   preferred_element_type=jnp.float32)
    y = jnp.maximum(acc1 + bias_ref[0:1, :], 0.0)
    yb = y.astype(jnp.bfloat16)
    zout = jnp.zeros((1, WC_out), jnp.bfloat16)

    # ---- K-concat staging for conv2 (intermediate never leaves VMEM) ----
    ycat_ref[:, WC_out:2 * WC_out] = yb
    for n in range(NB):
        r = n * H
        ycat_ref[r:r + 1, 0:WC_out] = zout
        ycat_ref[r + 1:r + H, 0:WC_out] = yb[r:r + H - 1]
        ycat_ref[r:r + H - 1, 2 * WC_out:3 * WC_out] = yb[r + 1:r + H]
        ycat_ref[r + H - 1:r + H, 2 * WC_out:3 * WC_out] = zout

    # ---- conv2 + BN2 + residual + ReLU ----
    acc2 = jnp.dot(ycat_ref[...], t2_ref[...],
                   preferred_element_type=jnp.float32)
    out = acc2 + bias_ref[1:2, :] + x            # exact f32 residual
    o_ref[...] = jnp.maximum(out, 0.0).astype(o_ref.dtype)


# ---------------------------------------------------------------------------
# One-time parameter preparation (hoisted out of the forward pass)
# ---------------------------------------------------------------------------
def _toeplitz_weights(w_hwio, W):
    """(3, 3, Cin, Cout) HWIO -> (3, W*Cin, W*Cout) width-block-Toeplitz weights.

    T[kh, wi*Cin + ci, wo*Cout + co] = w[kh, wi - wo + 1, ci, co] for |wi - wo| <= 1,
    else 0 -- the 'same'-padding width convolution folded into a dense matmul.
    """
    KH, KW, Cin, Cout = w_hwio.shape
    wi = jnp.arange(W)[:, None]
    wo = jnp.arange(W)[None, :]
    kw = wi - wo + (KW // 2)
    valid = (kw >= 0) & (kw < KW)
    kw_c = jnp.clip(kw, 0, KW - 1)
    blocks = w_hwio[:, kw_c]                                   # (KH, W, W, Cin, Cout)
    blocks = jnp.where(valid[None, :, :, None, None], blocks, 0.0)
    return blocks.transpose(0, 1, 3, 2, 4).reshape(KH, W * Cin, W * Cout)


def prepare_block_params(params, W, eps=1e-5):
    """Fold eval-mode BN into the conv weights / biases, build bf16 K-concat
    Toeplitz weights.  Call ONCE per parameter set (not per forward)."""
    w1, w2 = params["w1"], params["w2"]            # OIHW
    g1, b1, m1, v1 = params["bn1"]
    g2, b2, m2, v2 = params["bn2"]

    s1 = g1 / jnp.sqrt(v1 + eps)
    c1 = b1 - m1 * s1
    s2 = g2 / jnp.sqrt(v2 + eps)
    c2 = b2 - m2 * s2

    Cout, Cin = w1.shape[0], w1.shape[1]

    t1 = _toeplitz_weights(jnp.transpose(w1, (2, 3, 1, 0)), W)   # (3, W*Cin, W*Cout)
    t2 = _toeplitz_weights(jnp.transpose(w2, (2, 3, 1, 0)), W)
    # Fold BN scale into the weight columns (exact: conv is linear), K-concat reshape.
    t1 = (t1 * jnp.tile(s1, W)[None, None, :]).reshape(3 * W * Cin, W * Cout)
    t2 = (t2 * jnp.tile(s2, W)[None, None, :]).reshape(3 * W * Cout, W * Cout)

    biases = jnp.stack([jnp.tile(c1, W), jnp.tile(c2, W)])       # (2, W*Cout) f32
    return {"t1": t1.astype(jnp.bfloat16),
            "t2": t2.astype(jnp.bfloat16),
            "biases": biases.astype(jnp.float32)}


# ---------------------------------------------------------------------------
# Forward pass (stride=1, downsample=None, bn=True)
# ---------------------------------------------------------------------------
@jax.jit
def custom_block_forward(x_nchw, prep):
    """x_nchw: (N, C, H, W) float32. prep: output of prepare_block_params."""
    N, Cin, H, W = x_nchw.shape
    WC_in = W * Cin
    WC_out = prep["t1"].shape[1]

    # NCHW -> NHWC -> lane-dense rows stacked on M: (N*H, W*C)
    x_flat = jnp.transpose(x_nchw, (0, 2, 3, 1)).reshape(N * H, WC_in)

    G = 1                      # grid steps; set 2 on v7x to feed both TensorCores
    NB = N // G

    out_flat = pl.pallas_call(
        functools.partial(fused_block_kernel, NB=NB, H=H),
        out_shape=jax.ShapeDtypeStruct((N * H, WC_out), jnp.float32),
        grid=(G,),
        in_specs=[
            pl.BlockSpec((NB * H, WC_in), lambda g: (g, 0)),          # input rows
            pl.BlockSpec((3 * WC_in, WC_out), lambda g: (0, 0)),      # conv1 weight
            pl.BlockSpec((3 * WC_out, WC_out), lambda g: (0, 0)),     # conv2 weight
            pl.BlockSpec((2, WC_out), lambda g: (0, 0)),              # BN biases
        ],
        out_specs=pl.BlockSpec((NB * H, WC_out), lambda g: (g, 0)),
        scratch_shapes=[
            pltpu.VMEM((NB * H, 3 * WC_in), jnp.bfloat16),   # conv1 K-concat staging
            pltpu.VMEM((NB * H, 3 * WC_out), jnp.bfloat16),  # conv2 K-concat staging
        ],
        compiler_params=pltpu.CompilerParams(dimension_semantics=("parallel",)),
    )(x_flat, prep["t1"], prep["t2"], prep["biases"])

    out = out_flat.reshape(N, H, W, WC_out // W)
    return jnp.transpose(out, (0, 3, 1, 2))        # NHWC -> NCHW


# ---------------------------------------------------------------------------
# Pure-JAX reference (correctness check only)
# ---------------------------------------------------------------------------
def _ref_forward(x, params, eps=1e-5):
    def conv(x, w):
        return jax.lax.conv_general_dilated(
            x, w, (1, 1), ((1, 1), (1, 1)),
            dimension_numbers=("NCHW", "OIHW", "NCHW"))

    def bn(x, g, b, m, v):
        g, b, m, v = (t[None, :, None, None] for t in (g, b, m, v))
        return (x - m) / jnp.sqrt(v + eps) * g + b

    out = jnp.maximum(bn(conv(x, params["w1"]), *params["bn1"]), 0.0)
    out = bn(conv(out, params["w2"]), *params["bn2"]) + x
    return jnp.maximum(out, 0.0)


# ---------------------------------------------------------------------------
if __name__ == "__main__":
    N, C, H, W = 2, 8, 16, 16          # inplanes = planes = 8, stride=1  (W*C = 128 lanes)
    key = jax.random.PRNGKey(0)
    ks = jax.random.split(key, 9)

    x = jax.random.normal(ks[0], (N, C, H, W), jnp.float32)
    params = {
        "w1": jax.random.normal(ks[1], (C, C, 3, 3), jnp.float32) * 0.1,
        "w2": jax.random.normal(ks[2], (C, C, 3, 3), jnp.float32) * 0.1,
        "bn1": (jax.random.normal(ks[3], (C,), jnp.float32) * 0.1 + 1.0,     # gamma
                jax.random.normal(ks[4], (C,), jnp.float32) * 0.1,           # beta
                jax.random.normal(ks[5], (C,), jnp.float32) * 0.1,           # running mean
                jnp.abs(jax.random.normal(ks[6], (C,), jnp.float32)) + 0.5), # running var
        "bn2": (jax.random.normal(ks[7], (C,), jnp.float32) * 0.1 + 1.0,
                jax.random.normal(ks[8], (C,), jnp.float32) * 0.1,
                jnp.zeros((C,), jnp.float32),
                jnp.ones((C,), jnp.float32)),
    }

    prep = jax.tree_util.tree_map(jax.block_until_ready,
                                  prepare_block_params(params, W))   # one-time prep

    out = jax.block_until_ready(custom_block_forward(x, prep))
    ref = jax.block_until_ready(_ref_forward(x, params))

    assert out.shape == (N, C, H, W)
    # bf16 MXU operands -> loosened tolerance (accumulation is f32).
    err = float(jnp.max(jnp.abs(out - ref)))
    assert jnp.allclose(out, ref, atol=5e-2, rtol=5e-2), err
    print("KERNEL_OK")
</pallas_src>

<mosaic_0001>
module attributes {stable_mosaic.version = 11 : i64} {
  func.func @fused_block_kernel(%arg0: i32, %arg1: memref<32x128xf32, #tpu.memory_space<vmem>>, %arg2: memref<384x128xbf16, #tpu.memory_space<vmem>>, %arg3: memref<384x128xbf16, #tpu.memory_space<vmem>>, %arg4: memref<2x128xf32, #tpu.memory_space<vmem>>, %arg5: memref<32x128xf32, #tpu.memory_space<vmem>>, %arg6: memref<32x384xbf16, #tpu.memory_space<vmem>>, %arg7: memref<32x384xbf16, #tpu.memory_space<vmem>>) attributes {dimension_semantics = [#tpu.dimension_semantics<parallel>], iteration_bounds = array<i64: 1>, scalar_prefetch = 0 : i64, scratch_operands = 2 : i64, tpu.core_type = #tpu.core_type<tc>, window_params = [{transform_indices = @transform_0, window_bounds = array<i64: 32, 128>}, {pipeline_mode = #tpu.pipeline_mode<synchronous>, transform_indices = @transform_1, window_bounds = array<i64: 384, 128>}, {pipeline_mode = #tpu.pipeline_mode<synchronous>, transform_indices = @transform_2, window_bounds = array<i64: 384, 128>}, {pipeline_mode = #tpu.pipeline_mode<synchronous>, transform_indices = @transform_3, window_bounds = array<i64: 2, 128>}, {transform_indices = @transform_4, window_bounds = array<i64: 32, 128>}]} {
    %c0 = arith.constant 0 : index
    %c0_0 = arith.constant 0 : index
    %0 = vector.load %arg1[%c0, %c0_0] : memref<32x128xf32, #tpu.memory_space<vmem>>, vector<32x128xf32>
    %1 = arith.truncf %0 : vector<32x128xf32> to vector<32x128xbf16>
    %cst = arith.constant 0.000000e+00 : bf16
    %2 = vector.broadcast %cst : bf16 to vector<1x128xbf16>
    %c0_1 = arith.constant 0 : index
    %c128 = arith.constant 128 : index
    %3 = vector.load %arg6[%c0_1, %c128] : memref<32x384xbf16, #tpu.memory_space<vmem>>, vector<32x128xbf16>
    tpu.vector_store %arg6[%c0_1, %c128], %1 {strides = array<i32>} : memref<32x384xbf16, #tpu.memory_space<vmem>>, vector<32x128xbf16>,
    %c0_2 = arith.constant 0 : index
    %c0_3 = arith.constant 0 : index
    %4 = vector.load %arg6[%c0_2, %c0_3] : memref<32x384xbf16, #tpu.memory_space<vmem>>, vector<1x128xbf16>
    tpu.vector_store %arg6[%c0_2, %c0_3], %2 {strides = array<i32>} : memref<32x384xbf16, #tpu.memory_space<vmem>>, vector<1x128xbf16>,
    %5 = vector.extract_strided_slice %1 {offsets = [0, 0], sizes = [15, 128], strides = [1, 1]} : vector<32x128xbf16> to vector<15x128xbf16>
    %c1 = arith.constant 1 : index
    %c0_4 = arith.constant 0 : index
    %6 = vector.load %arg6[%c1, %c0_4] : memref<32x384xbf16, #tpu.memory_space<vmem>>, vector<15x128xbf16>
    tpu.vector_store %arg6[%c1, %c0_4], %5 {strides = array<i32>} : memref<32x384xbf16, #tpu.memory_space<vmem>>, vector<15x128xbf16>,
    %7 = vector.extract_strided_slice %1 {offsets = [1, 0], sizes = [15, 128], strides = [1, 1]} : vector<32x128xbf16> to vector<15x128xbf16>
    %c0_5 = arith.constant 0 : index
    %c256 = arith.constant 256 : index
    %8 = vector.load %arg6[%c0_5, %c256] : memref<32x384xbf16, #tpu.memory_space<vmem>>, vector<15x128xbf16>
    tpu.vector_store %arg6[%c0_5, %c256], %7 {strides = array<i32>} : memref<32x384xbf16, #tpu.memory_space<vmem>>, vector<15x128xbf16>,
    %c15 = arith.constant 15 : index
    %c256_6 = arith.constant 256 : index
    %9 = vector.load %arg6[%c15, %c256_6] : memref<32x384xbf16, #tpu.memory_space<vmem>>, vector<1x128xbf16>
    tpu.vector_store %arg6[%c15, %c256_6], %2 {strides = array<i32>} : memref<32x384xbf16, #tpu.memory_space<vmem>>, vector<1x128xbf16>,
    %c16 = arith.constant 16 : index
    %c0_7 = arith.constant 0 : index
    %10 = vector.load %arg6[%c16, %c0_7] : memref<32x384xbf16, #tpu.memory_space<vmem>>, vector<1x128xbf16>
    tpu.vector_store %arg6[%c16, %c0_7], %2 {strides = array<i32>} : memref<32x384xbf16, #tpu.memory_space<vmem>>, vector<1x128xbf16>,
    %11 = vector.extract_strided_slice %1 {offsets = [16, 0], sizes = [15, 128], strides = [1, 1]} : vector<32x128xbf16> to vector<15x128xbf16>
    %c17 = arith.constant 17 : index
    %c0_8 = arith.constant 0 : index
    %12 = vector.load %arg6[%c17, %c0_8] : memref<32x384xbf16, #tpu.memory_space<vmem>>, vector<15x128xbf16>
    tpu.vector_store %arg6[%c17, %c0_8], %11 {strides = array<i32>} : memref<32x384xbf16, #tpu.memory_space<vmem>>, vector<15x128xbf16>,
    %13 = vector.extract_strided_slice %1 {offsets = [17, 0], sizes = [15, 128], strides = [1, 1]} : vector<32x128xbf16> to vector<15x128xbf16>
    %c16_9 = arith.constant 16 : index
    %c256_10 = arith.constant 256 : index
    %14 = vector.load %arg6[%c16_9, %c256_10] : memref<32x384xbf16, #tpu.memory_space<vmem>>, vector<15x128xbf16>
    tpu.vector_store %arg6[%c16_9, %c256_10], %13 {strides = array<i32>} : memref<32x384xbf16, #tpu.memory_space<vmem>>, vector<15x128xbf16>,
    %c31 = arith.constant 31 : index
    %c256_11 = arith.constant 256 : index
    %15 = vector.load %arg6[%c31, %c256_11] : memref<32x384xbf16, #tpu.memory_space<vmem>>, vector<1x128xbf16>
    tpu.vector_store %arg6[%c31, %c256_11], %2 {strides = array<i32>} : memref<32x384xbf16, #tpu.memory_space<vmem>>, vector<1x128xbf16>,
    %c0_12 = arith.constant 0 : index
    %c0_13 = arith.constant 0 : index
    %16 = vector.load %arg6[%c0_12, %c0_13] : memref<32x384xbf16, #tpu.memory_space<vmem>>, vector<32x384xbf16>
    %c0_14 = arith.constant 0 : index
    %c0_15 = arith.constant 0 : index
    %17 = vector.load %arg2[%c0_14, %c0_15] : memref<384x128xbf16, #tpu.memory_space<vmem>>, vector<384x128xbf16>
    %cst_16 = arith.constant dense<0.000000e+00> : vector<32x128xf32>
    %18 = tpu.matmul %16, %17, %cst_16 {dimension_numbers = #tpu.dot_dimension_numbers<[1], [0], [0], [1], [0, 0, 1, 1], [], []>} : vector<32x384xbf16>, vector<384x128xbf16>, vector<32x128xf32> -> vector<32x128xf32>
    %c0_17 = arith.constant 0 : index
    %c0_18 = arith.constant 0 : index
    %19 = vector.load %arg4[%c0_17, %c0_18] : memref<2x128xf32, #tpu.memory_space<vmem>>, vector<1x128xf32>
    %20 = vector.broadcast %19 : vector<1x128xf32> to vector<32x128xf32>
    %21 = arith.addf %18, %20 : vector<32x128xf32>
    %cst_19 = arith.constant 0.000000e+00 : f32
    %22 = vector.broadcast %cst_19 : f32 to vector<32x128xf32>
    %23 = arith.maximumf %21, %22 : vector<32x128xf32>
    %24 = arith.truncf %23 : vector<32x128xf32> to vector<32x128xbf16>
    %cst_20 = arith.constant 0.000000e+00 : bf16
    %25 = vector.broadcast %cst_20 : bf16 to vector<1x128xbf16>
    %c0_21 = arith.constant 0 : index
    %c128_22 = arith.constant 128 : index
    %26 = vector.load %arg7[%c0_21, %c128_22] : memref<32x384xbf16, #tpu.memory_space<vmem>>, vector<32x128xbf16>
    tpu.vector_store %arg7[%c0_21, %c128_22], %24 {strides = array<i32>} : memref<32x384xbf16, #tpu.memory_space<vmem>>, vector<32x128xbf16>,
    %c0_23 = arith.constant 0 : index
    %c0_24 = arith.constant 0 : index
    %27 = vector.load %arg7[%c0_23, %c0_24] : memref<32x384xbf16, #tpu.memory_space<vmem>>, vector<1x128xbf16>
    tpu.vector_store %arg7[%c0_23, %c0_24], %25 {strides = array<i32>} : memref<32x384xbf16, #tpu.memory_space<vmem>>, vector<1x128xbf16>,
    %28 = vector.extract_strided_slice %24 {offsets = [0, 0], sizes = [15, 128], strides = [1, 1]} : vector<32x128xbf16> to vector<15x128xbf16>
    %c1_25 = arith.constant 1 : index
    %c0_26 = arith.constant 0 : index
    %29 = vector.load %arg7[%c1_25, %c0_26] : memref<32x384xbf16, #tpu.memory_space<vmem>>, vector<15x128xbf16>
    tpu.vector_store %arg7[%c1_25, %c0_26], %28 {strides = array<i32>} : memref<32x384xbf16, #tpu.memory_space<vmem>>, vector<15x128xbf16>,
    %30 = vector.extract_strided_slice %24 {offsets = [1, 0], sizes = [15, 128], strides = [1, 1]} : vector<32x128xbf16> to vector<15x128xbf16>
    %c0_27 = arith.constant 0 : index
    %c256_28 = arith.constant 256 : index
    %31 = vector.load %arg7[%c0_27, %c256_28] : memref<32x384xbf16, #tpu.memory_space<vmem>>, vector<15x128xbf16>
    tpu.vector_store %arg7[%c0_27, %c256_28], %30 {strides = array<i32>} : memref<32x384xbf16, #tpu.memory_space<vmem>>, vector<15x128xbf16>,
    %c15_29 = arith.constant 15 : index
    %c256_30 = arith.constant 256 : index
    %32 = vector.load %arg7[%c15_29, %c256_30] : memref<32x384xbf16, #tpu.memory_space<vmem>>, vector<1x128xbf16>
    tpu.vector_store %arg7[%c15_29, %c256_30], %25 {strides = array<i32>} : memref<32x384xbf16, #tpu.memory_space<vmem>>, vector<1x128xbf16>,
    %c16_31 = arith.constant 16 : index
    %c0_32 = arith.constant 0 : index
    %33 = vector.load %arg7[%c16_31, %c0_32] : memref<32x384xbf16, #tpu.memory_space<vmem>>, vector<1x128xbf16>
    tpu.vector_store %arg7[%c16_31, %c0_32], %25 {strides = array<i32>} : memref<32x384xbf16, #tpu.memory_space<vmem>>, vector<1x128xbf16>,
    %34 = vector.extract_strided_slice %24 {offsets = [16, 0], sizes = [15, 128], strides = [1, 1]} : vector<32x128xbf16> to vector<15x128xbf16>
    %c17_33 = arith.constant 17 : index
    %c0_34 = arith.constant 0 : index
    %35 = vector.load %arg7[%c17_33, %c0_34] : memref<32x384xbf16, #tpu.memory_space<vmem>>, vector<15x128xbf16>
    tpu.vector_store %arg7[%c17_33, %c0_34], %34 {strides = array<i32>} : memref<32x384xbf16, #tpu.memory_space<vmem>>, vector<15x128xbf16>,
    %36 = vector.extract_strided_slice %24 {offsets = [17, 0], sizes = [15, 128], strides = [1, 1]} : vector<32x128xbf16> to vector<15x128xbf16>
    %c16_35 = arith.constant 16 : index
    %c256_36 = arith.constant 256 : index
    %37 = vector.load %arg7[%c16_35, %c256_36] : memref<32x384xbf16, #tpu.memory_space<vmem>>, vector<15x128xbf16>
    tpu.vector_store %arg7[%c16_35, %c256_36], %36 {strides = array<i32>} : memref<32x384xbf16, #tpu.memory_space<vmem>>, vector<15x128xbf16>,
    %c31_37 = arith.constant 31 : index
    %c256_38 = arith.constant 256 : index
    %38 = vector.load %arg7[%c31_37, %c256_38] : memref<32x384xbf16, #tpu.memory_space<vmem>>, vector<1x128xbf16>
    tpu.vector_store %arg7[%c31_37, %c256_38], %25 {strides = array<i32>} : memref<32x384xbf16, #tpu.memory_space<vmem>>, vector<1x128xbf16>,
    %c0_39 = arith.constant 0 : index
    %c0_40 = arith.constant 0 : index
    %39 = vector.load %arg7[%c0_39, %c0_40] : memref<32x384xbf16, #tpu.memory_space<vmem>>, vector<32x384xbf16>
    %c0_41 = arith.constant 0 : index
    %c0_42 = arith.constant 0 : index
    %40 = vector.load %arg3[%c0_41, %c0_42] : memref<384x128xbf16, #tpu.memory_space<vmem>>, vector<384x128xbf16>
    %cst_43 = arith.constant dense<0.000000e+00> : vector<32x128xf32>
    %41 = tpu.matmul %39, %40, %cst_43 {dimension_numbers = #tpu.dot_dimension_numbers<[1], [0], [0], [1], [0, 0, 1, 1], [], []>} : vector<32x384xbf16>, vector<384x128xbf16>, vector<32x128xf32> -> vector<32x128xf32>
    %c1_44 = arith.constant 1 : index
    %c0_45 = arith.constant 0 : index
    %42 = vector.load %arg4[%c1_44, %c0_45] : memref<2x128xf32, #tpu.memory_space<vmem>>, vector<1x128xf32>
    %43 = vector.broadcast %42 : vector<1x128xf32> to vector<32x128xf32>
    %44 = arith.addf %41, %43 : vector<32x128xf32>
    %45 = arith.addf %44, %0 : vector<32x128xf32>
    %cst_46 = arith.constant 0.000000e+00 : f32
    %46 = vector.broadcast %cst_46 : f32 to vector<32x128xf32>
    %47 = arith.maximumf %45, %46 : vector<32x128xf32>
    %c0_47 = arith.constant 0 : index
    %c0_48 = arith.constant 0 : index
    %48 = vector.load %arg5[%c0_47, %c0_48] : memref<32x128xf32, #tpu.memory_space<vmem>>, vector<32x128xf32>
    tpu.vector_store %arg5[%c0_47, %c0_48], %47 {strides = array<i32>} : memref<32x128xf32, #tpu.memory_space<vmem>>, vector<32x128xf32>,
    return
  }
  func.func @transform_0(%arg0: i32) -> (i32, i32) {
    %c0_i32 = arith.constant 0 : i32
    %c0_i32_0 = arith.constant 0 : i32
    return %arg0, %c0_i32 : i32, i32
  }
  func.func @transform_1(%arg0: i32) -> (i32, i32) {
    %c0_i32 = arith.constant 0 : i32
    %c0_i32_0 = arith.constant 0 : i32
    %c0_i32_1 = arith.constant 0 : i32
    return %c0_i32, %c0_i32_0 : i32, i32
  }
  func.func @transform_2(%arg0: i32) -> (i32, i32) {
    %c0_i32 = arith.constant 0 : i32
    %c0_i32_0 = arith.constant 0 : i32
    %c0_i32_1 = arith.constant 0 : i32
    return %c0_i32, %c0_i32_0 : i32, i32
  }
  func.func @transform_3(%arg0: i32) -> (i32, i32) {
    %c0_i32 = arith.constant 0 : i32
    %c0_i32_0 = arith.constant 0 : i32
    %c0_i32_1 = arith.constant 0 : i32
    return %c0_i32, %c0_i32_0 : i32, i32
  }
  func.func @transform_4(%arg0: i32) -> (i32, i32) {
    %c0_i32 = arith.constant 0 : i32
    %c0_i32_0 = arith.constant 0 : i32
    return %arg0, %c0_i32 : i32, i32
  }
}

</mosaic_0001>

<llo_original>
// kernel: custom_block_forward.1
$region0: #{custom_block_forward.1}
  #allocation0 [shape = 'u32[]', space=smem, size = 0x4, offset = 0x4, fixed_abs, tag = 'smem constant byte address 0x4 - core index']
  #allocation1 [shape = 'u32[144,128]{1,0:T(1,128)}', space=vmem, size = 0x12000, scoped, tag = 'internal scratch']
  #allocation2 [shape = 'bf16[32,384]{1,0:T(8,128)(2,1)}', space=vmem, size = 0x6000, scoped, tag = 'scratch operand']
  #allocation3 [shape = 'bf16[32,384]{1,0:T(8,128)(2,1)}', space=vmem, size = 0x6000, scoped, tag = 'scratch operand']
  %s0 = inlined_call_operand.vmem [shape: f32[32,128], index: 0, kind: input, shape index: {}]
  %s1 = inlined_call_operand.vmem [shape: bf16[384,128], index: 1, kind: input, shape index: {}]
  %s2 = inlined_call_operand.vmem [shape: bf16[384,128], index: 2, kind: input, shape index: {}]
  %s3 = inlined_call_operand.vmem [shape: f32[2,128], index: 3, kind: input, shape index: {}]
  %s4 = inlined_call_operand.vmem [shape: f32[32,128], index: 4, kind: output, shape index: {}]
  %s5 = sld [smem:[#allocation0]]
  $region26: #{custom_block_forward.1} parent=0
    _
  %s7 = ssub.s32 1, %s5
  %s8 = scalar_select 0, %s7, %s5
  // Predicated region
  $region2: #{custom_block_forward.1} parent=0 // pred_check
    _
  $region3: #{custom_block_forward.1} parent=0 // pred_check_branch
    %10 = sbr.rel (0) target = $region5
  $region4: #{custom_block_forward.1} parent=0 // pred_region
    _
  $region5: #{custom_block_forward.1} parent=0 // pred_fallthru
    _
  // Predicated region
  $region6: #{custom_block_forward.1} parent=0 // pred_check
    _
  $region7: #{custom_block_forward.1} parent=0 // pred_check_branch
    %12 = sbr.rel (0) target = $region9
  $region8: #{custom_block_forward.1} parent=0 // pred_region
    _
  $region9: #{custom_block_forward.1} parent=0 // pred_fallthru
    _
  // Predicated region
  $region10: #{custom_block_forward.1} parent=0 // pred_check
    _
  $region11: #{custom_block_forward.1} parent=0 // pred_check_branch
    %14 = sbr.rel (0) target = $region13
  $region12: #{custom_block_forward.1} parent=0 // pred_region
    _
  $region13: #{custom_block_forward.1} parent=0 // pred_fallthru
    _
  // Predicated region
  $region14: #{custom_block_forward.1} parent=0 // pred_check
    _
  $region15: #{custom_block_forward.1} parent=0 // pred_check_branch
    %16 = sbr.rel (0) target = $region17
  $region16: #{custom_block_forward.1} parent=0 // pred_region
    _
  $region17: #{custom_block_forward.1} parent=0 // pred_fallthru
    _
  %v18 = vld [vmem:[%s0] sm:$0xff]
  %v19 = vld [vmem:[%s0 + $0x8] sm:$0xff]
  %v20 = vld [vmem:[%s0 + $0x10] sm:$0xff]
  %v21 = vld [vmem:[%s0 + $0x18] sm:$0xff]
  %v22 = vpack.c.bf16 %v19, %v18
  %v23 = vpack.c.bf16 %v21, %v20
  %v26 = vunpack.c.l.b16 %v22
  %v27 = vunpack.c.h.b16 %v22
  %v28 = vunpack.c.l.b16 %v23
  %v29 = vunpack.c.h.b16 %v23
  %v30 = vpack.c.b16 %v26, %v26
  %v31 = vpack.c.b16 %v27, %v27
  %v32 = vpack.c.b16 %v28, %v28
  %v33 = vpack.c.b16 %v29, %v29
  %38 = vst [vmem:[#allocation2 + $0x4] sm:$0xf] %v30
  %39 = vst [vmem:[#allocation2 + $0x10] sm:$0xf] %v31
  %40 = vst [vmem:[#allocation2 + $0x1c] sm:$0xf] %v32
  %41 = vst [vmem:[#allocation2 + $0x28] sm:$0xf] %v33
  %vm42 = vcmask 1040384
  %vm43 = vsmask.f32 256
  %vm44 = vmand %vm42, %vm43
  %v45 = vld [vmem:[#allocation2] sm:$0x1]
  %v46 = vsel %vm44, 0, %v45
  %47 = vst [vmem:[#allocation2] sm:$0x1] %v46
  %vm48 = vsmask.f32 4368
  %vm49 = vmor %vm43, %vm48
  %v51 = vshrl.u32 %v30, 16
  %v53 = vrot.slane %v51, 7
  %v54 = vshll.u32 %v30, 16
  %v56 = vor.u32 %v53, %v54
  %v57 = vrot.slane %v53, 4
  %v59 = vshrl.u32 %v31, 16
  %v61 = vrot.slane %v59, 7
  %v62 = vshll.u32 %v31, 16
  %v64 = vor.u32 %v61, %v62
  %v65 = vsel %vm49, %v57, %v64
  %vm68 = vcmask 1043456
  %vm69 = vsmask.f32 7938
  %vm70 = vmand %vm68, %vm69
  %v71 = vld [vmem:[#allocation2] sm:$0xf]
  %v72 = vsel %vm70, %v56, %v71
  %73 = vst [vmem:[#allocation2] sm:$0xf] %v72
  %74 = vst [vmem:[#allocation2 + $0xc] sm:$0xf] %v65
  %vm75 = vsmask.f32 3328
  %vm76 = vsmask.f32 7440
  %vm77 = vmor %vm75, %vm76
  %v78 = vrot.slane %v51, 4
  %v79 = vrot.slane %v54, 5
  %v80 = vor.u32 %v78, %v79
  %v81 = vrot.slane %v80, 4
  %v82 = vrot.slane %v62, 5
  %v83 = vsel %vm77, %v81, %v82
  %v84 = vrot.slane %v59, 4
  %v85 = vor.u32 %v84, %v82
  %v86 = vrot.slane %v85, 4
  %89 = vst [vmem:[#allocation2 + $0x8] sm:$0xf] %v83
  %vm90 = vmand %vm68, %vm75
  %v91 = vld [vmem:[#allocation2 + $0x14] sm:$0xf]
  %v92 = vsel %vm90, %v86, %v91
  %93 = vst [vmem:[#allocation2 + $0x14] sm:$0xf] %v92
  %vm94 = vcmask 1043459
  %vm95 = vsmask.f32 7950
  %vm96 = vmand %vm94, %vm95
  %v97 = vld [vmem:[#allocation2 + $0x14] sm:$0x8]
  %v98 = vsel %vm96, 0, %v97
  %99 = vst [vmem:[#allocation2 + $0x14] sm:$0x8] %v98
  %v100 = vld [vmem:[#allocation2 + $0x18] sm:$0x1]
  %v101 = vsel %vm44, 0, %v100
  %102 = vst [vmem:[#allocation2 + $0x18] sm:$0x1] %v101
  %v104 = vshrl.u32 %v32, 16
  %v106 = vrot.slane %v104, 7
  %v107 = vshll.u32 %v32, 16
  %v109 = vor.u32 %v106, %v107
  %v110 = vrot.slane %v106, 4
  %v112 = vshrl.u32 %v33, 16
  %v114 = vrot.slane %v112, 7
  %v115 = vshll.u32 %v33, 16
  %v117 = vor.u32 %v114, %v115
  %v118 = vsel %vm49, %v110, %v117
  %v121 = vld [vmem:[#allocation2 + $0x18] sm:$0xf]
  %v122 = vsel %vm70, %v109, %v121
  %123 = vst [vmem:[#allocation2 + $0x18] sm:$0xf] %v122
  %124 = vst [vmem:[#allocation2 + $0x24] sm:$0xf] %v118
  %v125 = vrot.slane %v104, 4
  %v126 = vrot.slane %v107, 5
  %v127 = vor.u32 %v125, %v126
  %v128 = vrot.slane %v127, 4
  %v129 = vrot.slane %v115, 5
  %v130 = vsel %vm77, %v128, %v129
  %v131 = vrot.slane %v112, 4
  %v132 = vor.u32 %v131, %v129
  %v133 = vrot.slane %v132, 4
  %136 = vst [vmem:[#allocation2 + $0x20] sm:$0xf] %v130
  %v137 = vld [vmem:[#allocation2 + $0x2c] sm:$0xf]
  %v138 = vsel %vm90, %v133, %v137
  %139 = vst [vmem:[#allocation2 + $0x2c] sm:$0xf] %v138
  %v140 = vld [vmem:[#allocation2 + $0x2c] sm:$0x8]
  %v141 = vsel %vm96, 0, %v140
  %142 = vst [vmem:[#allocation2 + $0x2c] sm:$0x8] %v141
  %v143 = vld [vmem:[#allocation2] sm:$0xff]
  %v144 = vld [vmem:[#allocation2 + $0x8] sm:$0xf]
  %v145 = vld [vmem:[#allocation2 + $0xc] sm:$0xff]
  %v146 = vld [vmem:[#allocation2 + $0x14] sm:$0xf]
  %v147 = vld [vmem:[#allocation2 + $0x18] sm:$0xff]
  %v148 = vld [vmem:[#allocation2 + $0x20] sm:$0xf]
  %v149 = vld [vmem:[#allocation2 + $0x24] sm:$0xff]
  %v150 = vld [vmem:[#allocation2 + $0x2c] sm:$0xf]
  %v151 = vld [vmem:[%s1] sm:$0xf]
  %v152 = vld [vmem:[%s1 + $0x4] sm:$0xf]
  %v153 = vld [vmem:[%s1 + $0x8] sm:$0xf]
  %v154 = vld [vmem:[%s1 + $0xc] sm:$0xf]
  %v155 = vld [vmem:[%s1 + $0x10] sm:$0xf]
  %v156 = vld [vmem:[%s1 + $0x14] sm:$0xf]
  %v157 = vld [vmem:[%s1 + $0x18] sm:$0xf]
  %v158 = vld [vmem:[%s1 + $0x1c] sm:$0xf]
  %v159 = vld [vmem:[%s1 + $0x20] sm:$0xf]
  %v160 = vld [vmem:[%s1 + $0x24] sm:$0xf]
  %v161 = vld [vmem:[%s1 + $0x28] sm:$0xf]
  %v162 = vld [vmem:[%s1 + $0x2c] sm:$0xf]
  %v163 = vld [vmem:[%s1 + $0x30] sm:$0xf]
  %v164 = vld [vmem:[%s1 + $0x34] sm:$0xf]
  %v165 = vld [vmem:[%s1 + $0x38] sm:$0xf]
  %v166 = vld [vmem:[%s1 + $0x3c] sm:$0xf]
  %v167 = vld [vmem:[%s1 + $0x40] sm:$0xf]
  %v168 = vld [vmem:[%s1 + $0x44] sm:$0xf]
  %v169 = vld [vmem:[%s1 + $0x48] sm:$0xf]
  %v170 = vld [vmem:[%s1 + $0x4c] sm:$0xf]
  %v171 = vld [vmem:[%s1 + $0x50] sm:$0xf]
  %v172 = vld [vmem:[%s1 + $0x54] sm:$0xf]
  %v173 = vld [vmem:[%s1 + $0x58] sm:$0xf]
  %v174 = vld [vmem:[%s1 + $0x5c] sm:$0xf]
  %v175 = vld [vmem:[%s1 + $0x60] sm:$0xf]
  %v176 = vld [vmem:[%s1 + $0x64] sm:$0xf]
  %v177 = vld [vmem:[%s1 + $0x68] sm:$0xf]
  %v178 = vld [vmem:[%s1 + $0x6c] sm:$0xf]
  %v179 = vld [vmem:[%s1 + $0x70] sm:$0xf]
  %v180 = vld [vmem:[%s1 + $0x74] sm:$0xf]
  %v181 = vld [vmem:[%s1 + $0x78] sm:$0xf]
  %v182 = vld [vmem:[%s1 + $0x7c] sm:$0xf]
  %v183 = vld [vmem:[%s1 + $0x80] sm:$0xf]
  %v184 = vld [vmem:[%s1 + $0x84] sm:$0xf]
  %v185 = vld [vmem:[%s1 + $0x88] sm:$0xf]
  %v186 = vld [vmem:[%s1 + $0x8c] sm:$0xf]
  %v187 = vld [vmem:[%s1 + $0x90] sm:$0xf]
  %v188 = vld [vmem:[%s1 + $0x94] sm:$0xf]
  %v189 = vld [vmem:[%s1 + $0x98] sm:$0xf]
  %v190 = vld [vmem:[%s1 + $0x9c] sm:$0xf]
  %v191 = vld [vmem:[%s1 + $0xa0] sm:$0xf]
  %v192 = vld [vmem:[%s1 + $0xa4] sm:$0xf]
  %v193 = vld [vmem:[%s1 + $0xa8] sm:$0xf]
  %v194 = vld [vmem:[%s1 + $0xac] sm:$0xf]
  %v195 = vld [vmem:[%s1 + $0xb0] sm:$0xf]
  %v196 = vld [vmem:[%s1 + $0xb4] sm:$0xf]
  %v197 = vld [vmem:[%s1 + $0xb8] sm:$0xf]
  %v198 = vld [vmem:[%s1 + $0xbc] sm:$0xf]
  %v199 = vld [vmem:[%s3] sm:$0x1]
  %v200 = vlaneseq
  %v201 = vshrl.u32 %v200, 7
  %v202 = vsub.s32 0, %v201
  %v203 = vrot.slane %v199, %v202
  %v212 = vunpack.c.l.b16 %v143
  %v213 = vunpack.c.h.b16 %v143
  %v214 = vunpack.c.l.b16 %v144
  %v215 = vunpack.c.l.b16 %v145
  %v216 = vunpack.c.h.b16 %v145
  %v217 = vunpack.c.l.b16 %v146
  %v218 = vunpack.c.l.b16 %v147
  %v219 = vunpack.c.h.b16 %v147
  %v220 = vunpack.c.l.b16 %v148
  %v221 = vunpack.c.l.b16 %v149
  %v222 = vunpack.c.h.b16 %v149
  %v223 = vunpack.c.l.b16 %v150
  %v224 = vpack.c.b16 %v215, %v212
  %v225 = vpack.c.b16 %v216, %v213
  %v226 = vpack.c.b16 %v217, %v214
  %v227 = vpack.c.b16 %v221, %v218
  %v228 = vpack.c.b16 %v222, %v219
  %v229 = vpack.c.b16 %v223, %v220
  %v284 = vunpack.c.l.b16 %v151
  %v285 = vunpack.c.l.b16 %v152
  %v286 = vunpack.c.l.b16 %v153
  %v287 = vunpack.c.l.b16 %v154
  %v288 = vunpack.c.l.b16 %v155
  %v289 = vunpack.c.l.b16 %v156
  %v290 = vunpack.c.l.b16 %v157
  %v291 = vunpack.c.l.b16 %v158
  %v292 = vunpack.c.l.b16 %v159
  %v293 = vunpack.c.l.b16 %v160
  %v294 = vunpack.c.l.b16 %v161
  %v295 = vunpack.c.l.b16 %v162
  %v296 = vunpack.c.l.b16 %v163
  %v297 = vunpack.c.l.b16 %v164
  %v298 = vunpack.c.l.b16 %v165
  %v299 = vunpack.c.l.b16 %v166
  %v300 = vunpack.c.l.b16 %v167
  %v301 = vunpack.c.l.b16 %v168
  %v302 = vunpack.c.l.b16 %v169
  %v303 = vunpack.c.l.b16 %v170
  %v304 = vunpack.c.l.b16 %v171
  %v305 = vunpack.c.l.b16 %v172
  %v306 = vunpack.c.l.b16 %v173
  %v307 = vunpack.c.l.b16 %v174
  %v308 = vunpack.c.l.b16 %v175
  %v309 = vunpack.c.l.b16 %v176
  %v310 = vunpack.c.l.b16 %v177
  %v311 = vunpack.c.l.b16 %v178
  %v312 = vunpack.c.l.b16 %v179
  %v313 = vunpack.c.l.b16 %v180
  %v314 = vunpack.c.l.b16 %v181
  %v315 = vunpack.c.l.b16 %v182
  %v316 = vunpack.c.l.b16 %v183
  %v317 = vunpack.c.l.b16 %v184
  %v318 = vunpack.c.l.b16 %v185
  %v319 = vunpack.c.l.b16 %v186
  %v320 = vunpack.c.l.b16 %v187
  %v321 = vunpack.c.l.b16 %v188
  %v322 = vunpack.c.l.b16 %v189
  %v323 = vunpack.c.l.b16 %v190
  %v324 = vunpack.c.l.b16 %v191
  %v325 = vunpack.c.l.b16 %v192
  %v326 = vunpack.c.l.b16 %v193
  %v327 = vunpack.c.l.b16 %v194
  %v328 = vunpack.c.l.b16 %v195
  %v329 = vunpack.c.l.b16 %v196
  %v330 = vunpack.c.l.b16 %v197
  %v331 = vunpack.c.l.b16 %v198
  %v332 = vpack.c.b16 %v285, %v284
  %v333 = vpack.c.b16 %v287, %v286
  %v334 = vpack.c.b16 %v289, %v288
  %v335 = vpack.c.b16 %v291, %v290
  %v336 = vpack.c.b16 %v293, %v292
  %v337 = vpack.c.b16 %v295, %v294
  %v338 = vpack.c.b16 %v297, %v296
  %v339 = vpack.c.b16 %v299, %v298
  %v340 = vpack.c.b16 %v301, %v300
  %v341 = vpack.c.b16 %v303, %v302
  %v342 = vpack.c.b16 %v305, %v304
  %v343 = vpack.c.b16 %v307, %v306
  %v344 = vpack.c.b16 %v309, %v308
  %v345 = vpack.c.b16 %v311, %v310
  %v346 = vpack.c.b16 %v313, %v312
  %v347 = vpack.c.b16 %v315, %v314
  %v348 = vpack.c.b16 %v317, %v316
  %v349 = vpack.c.b16 %v319, %v318
  %v350 = vpack.c.b16 %v321, %v320
  %v351 = vpack.c.b16 %v323, %v322
  %v352 = vpack.c.b16 %v325, %v324
  %v353 = vpack.c.b16 %v327, %v326
  %v354 = vpack.c.b16 %v329, %v328
  %v355 = vpack.c.b16 %v331, %v330
  %380 = vmatprep.subr.bf16.mxu0 0
  %381 = vmatpush1.bf16.msra.mxu0 %v339
  %382 = vmatprep.subr.bf16.mxu0 0
  %383 = vmatpush1.bf16.msra.mxu0 %v338
  %384 = vmatprep.subr.bf16.mxu0 0
  %385 = vmatpush1.bf16.msra.mxu0 %v337
  %386 = vmatprep.subr.bf16.mxu0 0
  %387 = vmatpush1.bf16.msra.mxu0 %v336
  %388 = vmatprep.subr.bf16.mxu0 0
  %389 = vmatpush1.bf16.msra.mxu0 %v335
  %390 = vmatprep.subr.bf16.mxu0 0
  %391 = vmatpush1.bf16.msra.mxu0 %v334
  %392 = vmatprep.subr.bf16.mxu0 0
  %393 = vmatpush1.bf16.msra.mxu0 %v333
  %394 = vmatprep.subr.bf16.mxu0 0
  %395 = vmatpush1.bf16.msra.mxu0 %v332
  %396 = vmatprep.subr.bf16.mxu0 0
  %397 = vmatpush2.bf16.msra.mxu0 %v347
  %398 = vmatprep.subr.bf16.mxu0 0
  %399 = vmatpush2.bf16.msra.mxu0 %v346
  %400 = vmatprep.subr.bf16.mxu0 0
  %401 = vmatpush2.bf16.msra.mxu0 %v345
  %402 = vmatprep.subr.bf16.mxu0 0
  %403 = vmatpush2.bf16.msra.mxu0 %v344
  %404 = vmatprep.subr.bf16.mxu0 0
  %405 = vmatpush2.bf16.msra.mxu0 %v343
  %406 = vmatprep.subr.bf16.mxu0 0
  %407 = vmatpush2.bf16.msra.mxu0 %v342
  %408 = vmatprep.subr.bf16.mxu0 0
  %409 = vmatpush2.bf16.msra.mxu0 %v341
  %410 = vmatprep.subr.bf16.mxu0 0
  %411 = vmatpush2.bf16.msra.mxu0 %v340
  %412 = vmatprep.mubr.bf16.mxu0 %v225
  %413 = vmatmul.mubr.bf16.gmra.mxu0 %v224
  %v414 = vpop.f32.mrf.mxu0
  %v415 = vadd.f32 %v203, %v414
  %v416 = vpop.f32.mrf.mxu0
  %v417 = vpop.f32.mrf.mxu0
  %v418 = vadd.f32 %v203, %v417
  %v419 = vpop.f32.mrf.mxu0
  %420 = vmatprep.mubr.bf16.mxu0 %v228
  %421 = vmatmul.mubr.bf16.gmra.mxu0 %v227
  %v422 = vpop.f32.mrf.mxu0
  %v423 = vadd.f32 %v203, %v422
  %v424 = vpop.f32.mrf.mxu0
  %v425 = vpop.f32.mrf.mxu0
  %v426 = vadd.f32 %v203, %v425
  %v427 = vpop.f32.mrf.mxu0
  %428 = vdwg.mxu0
  %429 = vmatprep.subr.bf16.mxu0 0
  %430 = vmatpush1.bf16.msra.mxu0 %v355
  %431 = vmatprep.subr.bf16.mxu0 0
  %432 = vmatpush1.bf16.msra.mxu0 %v354
  %433 = vmatprep.subr.bf16.mxu0 0
  %434 = vmatpush1.bf16.msra.mxu0 %v353
  %435 = vmatprep.subr.bf16.mxu0 0
  %436 = vmatpush1.bf16.msra.mxu0 %v352
  %437 = vmatprep.subr.bf16.mxu0 0
  %438 = vmatpush1.bf16.msra.mxu0 %v351
  %439 = vmatprep.subr.bf16.mxu0 0
  %440 = vmatpush1.bf16.msra.mxu0 %v350
  %441 = vmatprep.subr.bf16.mxu0 0
  %442 = vmatpush1.bf16.msra.mxu0 %v349
  %443 = vmatprep.subr.bf16.mxu0 0
  %444 = vmatpush1.bf16.msra.mxu0 %v348
  %445 = vmatprep.subr.bf16.mxu0 0
  %446 = vmatpush2.bf16.msra.mxu0 0
  %447 = vmatprep.subr.bf16.mxu0 0
  %448 = vmatpush2.bf16.msra.mxu0 0
  %449 = vmatprep.subr.bf16.mxu0 0
  %450 = vmatpush2.bf16.msra.mxu0 0
  %451 = vmatprep.subr.bf16.mxu0 0
  %452 = vmatpush2.bf16.msra.mxu0 0
  %453 = vmatprep.subr.bf16.mxu0 0
  %454 = vmatpush2.bf16.msra.mxu0 0
  %455 = vmatprep.subr.bf16.mxu0 0
  %456 = vmatpush2.bf16.msra.mxu0 0
  %457 = vmatprep.subr.bf16.mxu0 0
  %458 = vmatpush2.bf16.msra.mxu0 0
  %459 = vmatprep.subr.bf16.mxu0 0
  %460 = vmatpush2.bf16.msra.mxu0 0
  %461 = vmatprep.mubr.bf16.mxu0 0
  %462 = vmatmul.mubr.bf16.gmra.mxu0 %v226
  %v463 = vpop.f32.mrf.mxu0
  %v464 = vadd.f32 %v415, %v463
  %v465 = vpop.f32.mrf.mxu0
  %v466 = vpop.f32.mrf.mxu0
  %v467 = vadd.f32 %v418, %v466
  %v468 = vpop.f32.mrf.mxu0
  %469 = vmatprep.mubr.bf16.mxu0 0
  %470 = vmatmul.mubr.bf16.gmra.mxu0 %v229
  %v471 = vpop.f32.mrf.mxu0
  %v472 = vadd.f32 %v423, %v471
  %v473 = vpop.f32.mrf.mxu0
  %v474 = vpop.f32.mrf.mxu0
  %v475 = vadd.f32 %v426, %v474
  %v476 = vpop.f32.mrf.mxu0
  %477 = vdwg.mxu0
  %v478 = vmax.f32 %v464, 0.0
  %v479 = vmax.f32 %v467, 0.0
  %v480 = vmax.f32 %v472, 0.0
  %v481 = vmax.f32 %v475, 0.0
  %v482 = vpack.c.bf16 %v479, %v478
  %v483 = vpack.c.bf16 %v481, %v480
  %v486 = vunpack.c.l.b16 %v482
  %v487 = vunpack.c.h.b16 %v482
  %v488 = vunpack.c.l.b16 %v483
  %v489 = vunpack.c.h.b16 %v483
  %v490 = vpack.c.b16 %v486, %v486
  %v491 = vpack.c.b16 %v487, %v487
  %v492 = vpack.c.b16 %v488, %v488
  %v493 = vpack.c.b16 %v489, %v489
  %498 = vst [vmem:[#allocation3 + $0x4] sm:$0xf] %v490
  %499 = vst [vmem:[#allocation3 + $0x10] sm:$0xf] %v491
  %500 = vst [vmem:[#allocation3 + $0x1c] sm:$0xf] %v492
  %501 = vst [vmem:[#allocation3 + $0x28] sm:$0xf] %v493
  %v502 = vld [vmem:[#allocation3] sm:$0x1]
  %v503 = vsel %vm44, 0, %v502
  %504 = vst [vmem:[#allocation3] sm:$0x1] %v503
  %v506 = vshrl.u32 %v490, 16
  %v508 = vrot.slane %v506, 7
  %v509 = vshll.u32 %v490, 16
  %v511 = vor.u32 %v508, %v509
  %v512 = vrot.slane %v508, 4
  %v514 = vshrl.u32 %v491, 16
  %v516 = vrot.slane %v514, 7
  %v517 = vshll.u32 %v491, 16
  %v519 = vor.u32 %v516, %v517
  %v520 = vsel %vm49, %v512, %v519
  %v523 = vld [vmem:[#allocation3] sm:$0xf]
  %v524 = vsel %vm70, %v511, %v523
  %525 = vst [vmem:[#allocation3] sm:$0xf] %v524
  %526 = vst [vmem:[#allocation3 + $0xc] sm:$0xf] %v520
  %v527 = vrot.slane %v506, 4
  %v528 = vrot.slane %v509, 5
  %v529 = vor.u32 %v527, %v528
  %v530 = vrot.slane %v529, 4
  %v531 = vrot.slane %v517, 5
  %v532 = vsel %vm77, %v530, %v531
  %v533 = vrot.slane %v514, 4
  %v534 = vor.u32 %v533, %v531
  %v535 = vrot.slane %v534, 4
  %538 = vst [vmem:[#allocation3 + $0x8] sm:$0xf] %v532
  %v539 = vld [vmem:[#allocation3 + $0x14] sm:$0xf]
  %v540 = vsel %vm90, %v535, %v539
  %541 = vst [vmem:[#allocation3 + $0x14] sm:$0xf] %v540
  %v542 = vld [vmem:[#allocation3 + $0x14] sm:$0x8]
  %v543 = vsel %vm96, 0, %v542
  %544 = vst [vmem:[#allocation3 + $0x14] sm:$0x8] %v543
  %v545 = vld [vmem:[#allocation3 + $0x18] sm:$0x1]
  %v546 = vsel %vm44, 0, %v545
  %547 = vst [vmem:[#allocation3 + $0x18] sm:$0x1] %v546
  %v549 = vshrl.u32 %v492, 16
  %v551 = vrot.slane %v549, 7
  %v552 = vshll.u32 %v492, 16
  %v554 = vor.u32 %v551, %v552
  %v555 = vrot.slane %v551, 4
  %v557 = vshrl.u32 %v493, 16
  %v559 = vrot.slane %v557, 7
  %v560 = vshll.u32 %v493, 16
  %v562 = vor.u32 %v559, %v560
  %v563 = vsel %vm49, %v555, %v562
  %v566 = vld [vmem:[#allocation3 + $0x18] sm:$0xf]
  %v567 = vsel %vm70, %v554, %v566
  %568 = vst [vmem:[#allocation3 + $0x18] sm:$0xf] %v567
  %569 = vst [vmem:[#allocation3 + $0x24] sm:$0xf] %v563
  %v570 = vrot.slane %v549, 4
  %v571 = vrot.slane %v552, 5
  %v572 = vor.u32 %v570, %v571
  %v573 = vrot.slane %v572, 4
  %v574 = vrot.slane %v560, 5
  %v575 = vsel %vm77, %v573, %v574
  %v576 = vrot.slane %v557, 4
  %v577 = vor.u32 %v576, %v574
  %v578 = vrot.slane %v577, 4
  %581 = vst [vmem:[#allocation3 + $0x20] sm:$0xf] %v575
  %v582 = vld [vmem:[#allocation3 + $0x2c] sm:$0xf]
  %v583 = vsel %vm90, %v578, %v582
  %584 = vst [vmem:[#allocation3 + $0x2c] sm:$0xf] %v583
  %v585 = vld [vmem:[#allocation3 + $0x2c] sm:$0x8]
  %v586 = vsel %vm96, 0, %v585
  %587 = vst [vmem:[#allocation3 + $0x2c] sm:$0x8] %v586
  %v588 = vld [vmem:[#allocation3] sm:$0xff]
  %v589 = vld [vmem:[#allocation3 + $0x8] sm:$0xf]
  %v590 = vld [vmem:[#allocation3 + $0xc] sm:$0xff]
  %v591 = vld [vmem:[#allocation3 + $0x14] sm:$0xf]
  %v592 = vld [vmem:[#allocation3 + $0x18] sm:$0xff]
  %v593 = vld [vmem:[#allocation3 + $0x20] sm:$0xf]
  %v594 = vld [vmem:[#allocation3 + $0x24] sm:$0xff]
  %v595 = vld [vmem:[#allocation3 + $0x2c] sm:$0xf]
  %v596 = vld [vmem:[%s2] sm:$0xf]
  %v597 = vld [vmem:[%s2 + $0x4] sm:$0xf]
  %v598 = vld [vmem:[%s2 + $0x8] sm:$0xf]
  %v599 = vld [vmem:[%s2 + $0xc] sm:$0xf]
  %v600 = vld [vmem:[%s2 + $0x10] sm:$0xf]
  %v601 = vld [vmem:[%s2 + $0x14] sm:$0xf]
  %v602 = vld [vmem:[%s2 + $0x18] sm:$0xf]
  %v603 = vld [vmem:[%s2 + $0x1c] sm:$0xf]
  %v604 = vld [vmem:[%s2 + $0x20] sm:$0xf]
  %v605 = vld [vmem:[%s2 + $0x24] sm:$0xf]
  %v606 = vld [vmem:[%s2 + $0x28] sm:$0xf]
  %v607 = vld [vmem:[%s2 + $0x2c] sm:$0xf]
  %v608 = vld [vmem:[%s2 + $0x30] sm:$0xf]
  %v609 = vld [vmem:[%s2 + $0x34] sm:$0xf]
  %v610 = vld [vmem:[%s2 + $0x38] sm:$0xf]
  %v611 = vld [vmem:[%s2 + $0x3c] sm:$0xf]
  %v612 = vld [vmem:[%s2 + $0x40] sm:$0xf]
  %v613 = vld [vmem:[%s2 + $0x44] sm:$0xf]
  %v614 = vld [vmem:[%s2 + $0x48] sm:$0xf]
  %v615 = vld [vmem:[%s2 + $0x4c] sm:$0xf]
  %v616 = vld [vmem:[%s2 + $0x50] sm:$0xf]
  %v617 = vld [vmem:[%s2 + $0x54] sm:$0xf]
  %v618 = vld [vmem:[%s2 + $0x58] sm:$0xf]
  %v619 = vld [vmem:[%s2 + $0x5c] sm:$0xf]
  %v620 = vld [vmem:[%s2 + $0x60] sm:$0xf]
  %v621 = vld [vmem:[%s2 + $0x64] sm:$0xf]
  %v622 = vld [vmem:[%s2 + $0x68] sm:$0xf]
  %v623 = vld [vmem:[%s2 + $0x6c] sm:$0xf]
  %v624 = vld [vmem:[%s2 + $0x70] sm:$0xf]
  %v625 = vld [vmem:[%s2 + $0x74] sm:$0xf]
  %v626 = vld [vmem:[%s2 + $0x78] sm:$0xf]
  %v627 = vld [vmem:[%s2 + $0x7c] sm:$0xf]
  %v628 = vld [vmem:[%s2 + $0x80] sm:$0xf]
  %v629 = vld [vmem:[%s2 + $0x84] sm:$0xf]
  %v630 = vld [vmem:[%s2 + $0x88] sm:$0xf]
  %v631 = vld [vmem:[%s2 + $0x8c] sm:$0xf]
  %v632 = vld [vmem:[%s2 + $0x90] sm:$0xf]
  %v633 = vld [vmem:[%s2 + $0x94] sm:$0xf]
  %v634 = vld [vmem:[%s2 + $0x98] sm:$0xf]
  %v635 = vld [vmem:[%s2 + $0x9c] sm:$0xf]
  %v636 = vld [vmem:[%s2 + $0xa0] sm:$0xf]
  %v637 = vld [vmem:[%s2 + $0xa4] sm:$0xf]
  %v638 = vld [vmem:[%s2 + $0xa8] sm:$0xf]
  %v639 = vld [vmem:[%s2 + $0xac] sm:$0xf]
  %v640 = vld [vmem:[%s2 + $0xb0] sm:$0xf]
  %v641 = vld [vmem:[%s2 + $0xb4] sm:$0xf]
  %v642 = vld [vmem:[%s2 + $0xb8] sm:$0xf]
  %v643 = vld [vmem:[%s2 + $0xbc] sm:$0xf]
  %v644 = vld [vmem:[%s3 + $0x1] sm:$0x1]
  %v645 = vlaneseq
  %v646 = vshrl.u32 %v645, 7
  %v647 = vsub.s32 0, %v646
  %v648 = vrot.slane %v644, %v647
  %v657 = vunpack.c.l.b16 %v588
  %v658 = vunpack.c.h.b16 %v588
  %v659 = vunpack.c.l.b16 %v589
  %v660 = vunpack.c.l.b16 %v590
  %v661 = vunpack.c.h.b16 %v590
  %v662 = vunpack.c.l.b16 %v591
  %v663 = vunpack.c.l.b16 %v592
  %v664 = vunpack.c.h.b16 %v592
  %v665 = vunpack.c.l.b16 %v593
  %v666 = vunpack.c.l.b16 %v594
  %v667 = vunpack.c.h.b16 %v594
  %v668 = vunpack.c.l.b16 %v595
  %v669 = vpack.c.b16 %v660, %v657
  %v670 = vpack.c.b16 %v661, %v658
  %v671 = vpack.c.b16 %v662, %v659
  %v672 = vpack.c.b16 %v666, %v663
  %v673 = vpack.c.b16 %v667, %v664
  %v674 = vpack.c.b16 %v668, %v665
  %v729 = vunpack.c.l.b16 %v596
  %v730 = vunpack.c.l.b16 %v597
  %v731 = vunpack.c.l.b16 %v598
  %v732 = vunpack.c.l.b16 %v599
  %v733 = vunpack.c.l.b16 %v600
  %v734 = vunpack.c.l.b16 %v601
  %v735 = vunpack.c.l.b16 %v602
  %v736 = vunpack.c.l.b16 %v603
  %v737 = vunpack.c.l.b16 %v604
  %v738 = vunpack.c.l.b16 %v605
  %v739 = vunpack.c.l.b16 %v606
  %v740 = vunpack.c.l.b16 %v607
  %v741 = vunpack.c.l.b16 %v608
  %v742 = vunpack.c.l.b16 %v609
  %v743 = vunpack.c.l.b16 %v610
  %v744 = vunpack.c.l.b16 %v611
  %v745 = vunpack.c.l.b16 %v612
  %v746 = vunpack.c.l.b16 %v613
  %v747 = vunpack.c.l.b16 %v614
  %v748 = vunpack.c.l.b16 %v615
  %v749 = vunpack.c.l.b16 %v616
  %v750 = vunpack.c.l.b16 %v617
  %v751 = vunpack.c.l.b16 %v618
  %v752 = vunpack.c.l.b16 %v619
  %v753 = vunpack.c.l.b16 %v620
  %v754 = vunpack.c.l.b16 %v621
  %v755 = vunpack.c.l.b16 %v622
  %v756 = vunpack.c.l.b16 %v623
  %v757 = vunpack.c.l.b16 %v624
  %v758 = vunpack.c.l.b16 %v625
  %v759 = vunpack.c.l.b16 %v626
  %v760 = vunpack.c.l.b16 %v627
  %v761 = vunpack.c.l.b16 %v628
  %v762 = vunpack.c.l.b16 %v629
  %v763 = vunpack.c.l.b16 %v630
  %v764 = vunpack.c.l.b16 %v631
  %v765 = vunpack.c.l.b16 %v632
  %v766 = vunpack.c.l.b16 %v633
  %v767 = vunpack.c.l.b16 %v634
  %v768 = vunpack.c.l.b16 %v635
  %v769 = vunpack.c.l.b16 %v636
  %v770 = vunpack.c.l.b16 %v637
  %v771 = vunpack.c.l.b16 %v638
  %v772 = vunpack.c.l.b16 %v639
  %v773 = vunpack.c.l.b16 %v640
  %v774 = vunpack.c.l.b16 %v641
  %v775 = vunpack.c.l.b16 %v642
  %v776 = vunpack.c.l.b16 %v643
  %v777 = vpack.c.b16 %v730, %v729
  %v778 = vpack.c.b16 %v732, %v731
  %v779 = vpack.c.b16 %v734, %v733
  %v780 = vpack.c.b16 %v736, %v735
  %v781 = vpack.c.b16 %v738, %v737
  %v782 = vpack.c.b16 %v740, %v739
  %v783 = vpack.c.b16 %v742, %v741
  %v784 = vpack.c.b16 %v744, %v743
  %v785 = vpack.c.b16 %v746, %v745
  %v786 = vpack.c.b16 %v748, %v747
  %v787 = vpack.c.b16 %v750, %v749
  %v788 = vpack.c.b16 %v752, %v751
  %v789 = vpack.c.b16 %v754, %v753
  %v790 = vpack.c.b16 %v756, %v755
  %v791 = vpack.c.b16 %v758, %v757
  %v792 = vpack.c.b16 %v760, %v759
  %v793 = vpack.c.b16 %v762, %v761
  %v794 = vpack.c.b16 %v764, %v763
  %v795 = vpack.c.b16 %v766, %v765
  %v796 = vpack.c.b16 %v768, %v767
  %v797 = vpack.c.b16 %v770, %v769
  %v798 = vpack.c.b16 %v772, %v771
  %v799 = vpack.c.b16 %v774, %v773
  %v800 = vpack.c.b16 %v776, %v775
  %825 = vmatprep.subr.bf16.mxu0 0
  %826 = vmatpush1.bf16.msra.mxu0 %v784
  %827 = vmatprep.subr.bf16.mxu0 0
  %828 = vmatpush1.bf16.msra.mxu0 %v783
  %829 = vmatprep.subr.bf16.mxu0 0
  %830 = vmatpush1.bf16.msra.mxu0 %v782
  %831 = vmatprep.subr.bf16.mxu0 0
  %832 = vmatpush1.bf16.msra.mxu0 %v781
  %833 = vmatprep.subr.bf16.mxu0 0
  %834 = vmatpush1.bf16.msra.mxu0 %v780
  %835 = vmatprep.subr.bf16.mxu0 0
  %836 = vmatpush1.bf16.msra.mxu0 %v779
  %837 = vmatprep.subr.bf16.mxu0 0
  %838 = vmatpush1.bf16.msra.mxu0 %v778
  %839 = vmatprep.subr.bf16.mxu0 0
  %840 = vmatpush1.bf16.msra.mxu0 %v777
  %841 = vmatprep.subr.bf16.mxu0 0
  %842 = vmatpush2.bf16.msra.mxu0 %v792
  %843 = vmatprep.subr.bf16.mxu0 0
  %844 = vmatpush2.bf16.msra.mxu0 %v791
  %845 = vmatprep.subr.bf16.mxu0 0
  %846 = vmatpush2.bf16.msra.mxu0 %v790
  %847 = vmatprep.subr.bf16.mxu0 0
  %848 = vmatpush2.bf16.msra.mxu0 %v789
  %849 = vmatprep.subr.bf16.mxu0 0
  %850 = vmatpush2.bf16.msra.mxu0 %v788
  %851 = vmatprep.subr.bf16.mxu0 0
  %852 = vmatpush2.bf16.msra.mxu0 %v787
  %853 = vmatprep.subr.bf16.mxu0 0
  %854 = vmatpush2.bf16.msra.mxu0 %v786
  %855 = vmatprep.subr.bf16.mxu0 0
  %856 = vmatpush2.bf16.msra.mxu0 %v785
  %857 = vmatprep.mubr.bf16.mxu0 %v670
  %858 = vmatmul.mubr.bf16.gmra.mxu0 %v669
  %v859 = vpop.f32.mrf.mxu0
  %v860 = vadd.f32 %v648, %v859
  %v861 = vpop.f32.mrf.mxu0
  %v862 = vpop.f32.mrf.mxu0
  %v863 = vadd.f32 %v648, %v862
  %v864 = vpop.f32.mrf.mxu0
  %865 = vmatprep.mubr.bf16.mxu0 %v673
  %866 = vmatmul.mubr.bf16.gmra.mxu0 %v672
  %v867 = vpop.f32.mrf.mxu0
  %v868 = vadd.f32 %v648, %v867
  %v869 = vpop.f32.mrf.mxu0
  %v870 = vpop.f32.mrf.mxu0
  %v871 = vadd.f32 %v648, %v870
  %v872 = vpop.f32.mrf.mxu0
  %873 = vdwg.mxu0
  %874 = vmatprep.subr.bf16.mxu0 0
  %875 = vmatpush1.bf16.msra.mxu0 %v800
  %876 = vmatprep.subr.bf16.mxu0 0
  %877 = vmatpush1.bf16.msra.mxu0 %v799
  %878 = vmatprep.subr.bf16.mxu0 0
  %879 = vmatpush1.bf16.msra.mxu0 %v798
  %880 = vmatprep.subr.bf16.mxu0 0
  %881 = vmatpush1.bf16.msra.mxu0 %v797
  %882 = vmatprep.subr.bf16.mxu0 0
  %883 = vmatpush1.bf16.msra.mxu0 %v796
  %884 = vmatprep.subr.bf16.mxu0 0
  %885 = vmatpush1.bf16.msra.mxu0 %v795
  %886 = vmatprep.subr.bf16.mxu0 0
  %887 = vmatpush1.bf16.msra.mxu0 %v794
  %888 = vmatprep.subr.bf16.mxu0 0
  %889 = vmatpush1.bf16.msra.mxu0 %v793
  %890 = vmatprep.subr.bf16.mxu0 0
  %891 = vmatpush2.bf16.msra.mxu0 0
  %892 = vmatprep.subr.bf16.mxu0 0
  %893 = vmatpush2.bf16.msra.mxu0 0
  %894 = vmatprep.subr.bf16.mxu0 0
  %895 = vmatpush2.bf16.msra.mxu0 0
  %896 = vmatprep.subr.bf16.mxu0 0
  %897 = vmatpush2.bf16.msra.mxu0 0
  %898 = vmatprep.subr.bf16.mxu0 0
  %899 = vmatpush2.bf16.msra.mxu0 0
  %900 = vmatprep.subr.bf16.mxu0 0
  %901 = vmatpush2.bf16.msra.mxu0 0
  %902 = vmatprep.subr.bf16.mxu0 0
  %903 = vmatpush2.bf16.msra.mxu0 0
  %904 = vmatprep.subr.bf16.mxu0 0
  %905 = vmatpush2.bf16.msra.mxu0 0
  %906 = vmatprep.mubr.bf16.mxu0 0
  %907 = vmatmul.mubr.bf16.gmra.mxu0 %v671
  %v908 = vpop.f32.mrf.mxu0
  %v909 = vadd.f32 %v860, %v908
  %v910 = vpop.f32.mrf.mxu0
  %v911 = vpop.f32.mrf.mxu0
  %v912 = vadd.f32 %v863, %v911
  %v913 = vpop.f32.mrf.mxu0
  %914 = vmatprep.mubr.bf16.mxu0 0
  %915 = vmatmul.mubr.bf16.gmra.mxu0 %v674
  %v916 = vpop.f32.mrf.mxu0
  %v917 = vadd.f32 %v868, %v916
  %v918 = vpop.f32.mrf.mxu0
  %v919 = vpop.f32.mrf.mxu0
  %v920 = vadd.f32 %v871, %v919
  %v921 = vpop.f32.mrf.mxu0
  %922 = vdwg.mxu0
  %v923 = vadd.f32 %v909, %v18
  %v924 = vadd.f32 %v912, %v19
  %v925 = vadd.f32 %v917, %v20
  %v926 = vadd.f32 %v920, %v21
  %v927 = vmax.f32 %v923, 0.0
  %v928 = vmax.f32 %v924, 0.0
  %v929 = vmax.f32 %v925, 0.0
  %v930 = vmax.f32 %v926, 0.0
  %931 = vst [vmem:[%s4] sm:$0xff] %v927
  %932 = vst [vmem:[%s4 + $0x8] sm:$0xff] %v928
  %933 = vst [vmem:[%s4 + $0x10] sm:$0xff] %v929
  %934 = vst [vmem:[%s4 + $0x18] sm:$0xff] %v930
  // Predicated region
  $region18: #{custom_block_forward.1} parent=0 // pred_check
    _
  $region19: #{custom_block_forward.1} parent=0 // pred_check_branch
    %936 = sbr.rel (0) target = $region21
  $region20: #{custom_block_forward.1} parent=0 // pred_region
    _
  $region21: #{custom_block_forward.1} parent=0 // pred_fallthru
    _
  // Predicated region
  $region22: #{custom_block_forward.1} parent=0 // pred_check
    _
  $region23: #{custom_block_forward.1} parent=0 // pred_check_branch
    %938 = sbr.rel (0) target = $region25
  $region24: #{custom_block_forward.1} parent=0 // pred_region
    _
  $region25: #{custom_block_forward.1} parent=0 // pred_fallthru
    _

</llo_original>
